<compile_context>
chip_gen: v7x
topology: tpu7x:2x2x1
jax: 0.10.0
libtpu: 0.0.40
codegen_flags: <defaults>
</compile_context>

<pallas_src>
import jax
import jax.numpy as jnp
from jax.experimental import pallas as pl
from jax.experimental.pallas import tpu as pltpu


def _round_up(x, m):
    return -(-x // m) * m


def mlp_kernel(x_ref, w1_ref, b1_ref, w2_ref, b2_ref, w3_ref, b3_ref, o_ref):
    """One batch tile, fully fused in VMEM.

    x_ref : (batch_tile, 9)  row-major tile of x (ragged last tile clamped).
    o_ref : (3, batch_tile)  batch on lanes -> lane-dense stores.
    """
    # In-kernel layout flip (XLU; this kernel has no other cross-lane work).
    xT = x_ref[...].T                                                   # (9, bt)
    h1 = jnp.dot(w1_ref[...], xT, preferred_element_type=jnp.float32)   # (64, bt)
    h1 = jnp.maximum(h1 + b1_ref[...], 0.0)
    h2 = jnp.dot(w2_ref[...], h1, preferred_element_type=jnp.float32)   # (32, bt)
    h2 = jnp.maximum(h2 + b2_ref[...], 0.0)
    o = jnp.dot(w3_ref[...], h2, preferred_element_type=jnp.float32)    # (3, bt)
    o_ref[...] = (o + b3_ref[...]).astype(o_ref.dtype)


def _choose_batch_tile(batch):
    """Tile policy from the perf review:
      * big tiles (up to 8192 rows) amortize the ~0.35 us per-grid-step cost
        that otherwise dominates this memory-bound kernel;
      * for batches larger than one tile, target >= 2 tiles so both v7x
        TensorCores get work on the "parallel" grid axis;
      * 8192 rows keeps fp32 intermediates at ~3.5 MiB, comfortably inside
        v5e's 16 MiB default scoped VMEM.
    """
    max_tile = 8192
    if batch <= max_tile:
        return max(512, _round_up(batch, 512))
    return min(max_tile, max(512, _round_up(pl.cdiv(batch, 2), 512)))


def mlp_forward(x, params, *, batch_tile=None):
    """x: (B, 9).  params: PyTorch-orientation weights (out, in), biases (out, 1).
    Returns (B, 3) in x.dtype.  Pass bf16 x/params on v6e/v7x to halve HBM
    traffic (fp32 accumulation is kept via preferred_element_type)."""
    w1, b1 = params["w1"], params["b1"]
    w2, b2 = params["w2"], params["b2"]
    w3, b3 = params["w3"], params["b3"]

    B, d_in = x.shape
    d_out = w3.shape[0]
    assert d_in == w1.shape[1]

    if batch_tile is None:
        batch_tile = _choose_batch_tile(B)
    num_tiles = pl.cdiv(B, batch_tile)

    outT = pl.pallas_call(
        mlp_kernel,
        out_shape=jax.ShapeDtypeStruct((d_out, B), x.dtype),
        grid_spec=pltpu.PrefetchScalarGridSpec(
            num_scalar_prefetch=0,
            grid=(num_tiles,),
            in_specs=[
                pl.BlockSpec((batch_tile, d_in), lambda i: (i, 0)),  # x rows
                pl.BlockSpec(w1.shape, lambda i: (0, 0)),            # W1 (64, 9)
                pl.BlockSpec(b1.shape, lambda i: (0, 0)),            # b1 (64, 1)
                pl.BlockSpec(w2.shape, lambda i: (0, 0)),            # W2 (32, 64)
                pl.BlockSpec(b2.shape, lambda i: (0, 0)),            # b2 (32, 1)
                pl.BlockSpec(w3.shape, lambda i: (0, 0)),            # W3 (3, 32)
                pl.BlockSpec(b3.shape, lambda i: (0, 0)),            # b3 (3, 1)
            ],
            out_specs=pl.BlockSpec((d_out, batch_tile), lambda i: (0, i)),
        ),
        compiler_params=pltpu.CompilerParams(
            dimension_semantics=("parallel",)),
    )(x, w1, b1, w2, b2, w3, b3)

    return outT.T  # (B, 3)


def init_params(key):
    """Deterministic init mimicking PyTorch nn.Linear default
    (uniform in [-1/sqrt(fan_in), 1/sqrt(fan_in)]).  Weights kept in PyTorch
    (out, in) orientation; biases stored as (out, 1) for lane broadcasting."""
    dims = [(9, 64), (64, 32), (32, 3)]
    params = {}
    for idx, (fan_in, fan_out) in enumerate(dims, start=1):
        key, kw, kb = jax.random.split(key, 3)
        bound = 1.0 / (fan_in ** 0.5)
        params[f"w{idx}"] = jax.random.uniform(
            kw, (fan_out, fan_in), jnp.float32, -bound, bound)
        params[f"b{idx}"] = jax.random.uniform(
            kb, (fan_out, 1), jnp.float32, -bound, bound)
    return params


def mlp_reference(x, params):
    h1 = jnp.maximum(x @ params["w1"].T + params["b1"].T, 0.0)
    h2 = jnp.maximum(h1 @ params["w2"].T + params["b2"].T, 0.0)
    return h2 @ params["w3"].T + params["b3"].T


if __name__ == "__main__":
    key = jax.random.PRNGKey(0)
    kp, kx = jax.random.split(key)
    params = init_params(kp)

    B = 200  # small demo batch, deliberately not a multiple of any tile size
    x = jax.random.normal(kx, (B, 9), jnp.float32)
    ref = mlp_reference(x, params)

    # Default tile policy: single (ragged) 512-row tile for this small batch.
    out = jax.block_until_ready(mlp_forward(x, params))
    assert out.shape == (B, 3)
    assert jnp.allclose(out, ref, atol=1e-5, rtol=1e-5), "mismatch (default tile)"

    # Explicit small tile: exercises the multi-tile "parallel" grid plus the
    # ragged last tile (128 + 72 rows).
    out2 = jax.block_until_ready(mlp_forward(x, params, batch_tile=128))
    assert jnp.allclose(out2, ref, atol=1e-5, rtol=1e-5), "mismatch (tile=128)"

    print("KERNEL_OK")
</pallas_src>

<mosaic_0001>
module attributes {stable_mosaic.version = 11 : i64} {
  func.func @mlp_kernel(%arg0: i32, %arg1: memref<512x9xf32, #tpu.memory_space<vmem>>, %arg2: memref<64x9xf32, #tpu.memory_space<vmem>>, %arg3: memref<64x1xf32, #tpu.memory_space<vmem>>, %arg4: memref<32x64xf32, #tpu.memory_space<vmem>>, %arg5: memref<32x1xf32, #tpu.memory_space<vmem>>, %arg6: memref<3x32xf32, #tpu.memory_space<vmem>>, %arg7: memref<3x1xf32, #tpu.memory_space<vmem>>, %arg8: memref<3x512xf32, #tpu.memory_space<vmem>>) attributes {dimension_semantics = [#tpu.dimension_semantics<parallel>], iteration_bounds = array<i64: 1>, scalar_prefetch = 0 : i64, scratch_operands = 0 : i64, tpu.core_type = #tpu.core_type<tc>, window_params = [{transform_indices = @transform_0, window_bounds = array<i64: 512, 9>}, {pipeline_mode = #tpu.pipeline_mode<synchronous>, transform_indices = @transform_1, window_bounds = array<i64: 64, 9>}, {pipeline_mode = #tpu.pipeline_mode<synchronous>, transform_indices = @transform_2, window_bounds = array<i64: 64, 1>}, {pipeline_mode = #tpu.pipeline_mode<synchronous>, transform_indices = @transform_3, window_bounds = array<i64: 32, 64>}, {pipeline_mode = #tpu.pipeline_mode<synchronous>, transform_indices = @transform_4, window_bounds = array<i64: 32, 1>}, {pipeline_mode = #tpu.pipeline_mode<synchronous>, transform_indices = @transform_5, window_bounds = array<i64: 3, 32>}, {pipeline_mode = #tpu.pipeline_mode<synchronous>, transform_indices = @transform_6, window_bounds = array<i64: 3, 1>}, {transform_indices = @transform_7, window_bounds = array<i64: 3, 512>}]} {
    %c0 = arith.constant 0 : index
    %c0_0 = arith.constant 0 : index
    %0 = vector.load %arg1[%c0, %c0_0] : memref<512x9xf32, #tpu.memory_space<vmem>>, vector<512x9xf32>
    %1 = tpu.transpose %0, [1, 0] : vector<512x9xf32> -> vector<9x512xf32>
    %c0_1 = arith.constant 0 : index
    %c0_2 = arith.constant 0 : index
    %2 = vector.load %arg2[%c0_1, %c0_2] : memref<64x9xf32, #tpu.memory_space<vmem>>, vector<64x9xf32>
    %cst = arith.constant dense<0.000000e+00> : vector<64x512xf32>
    %3 = tpu.matmul %2, %1, %cst {dimension_numbers = #tpu.dot_dimension_numbers<[1], [0], [0], [1], [0, 0, 1, 1], [], []>} : vector<64x9xf32>, vector<9x512xf32>, vector<64x512xf32> -> vector<64x512xf32>
    %c0_3 = arith.constant 0 : index
    %c0_4 = arith.constant 0 : index
    %4 = vector.load %arg3[%c0_3, %c0_4] : memref<64x1xf32, #tpu.memory_space<vmem>>, vector<64x1xf32>
    %5 = vector.broadcast %4 : vector<64x1xf32> to vector<64x512xf32>
    %6 = arith.addf %3, %5 : vector<64x512xf32>
    %cst_5 = arith.constant 0.000000e+00 : f32
    %7 = vector.broadcast %cst_5 : f32 to vector<64x512xf32>
    %8 = arith.maximumf %6, %7 : vector<64x512xf32>
    %c0_6 = arith.constant 0 : index
    %c0_7 = arith.constant 0 : index
    %9 = vector.load %arg4[%c0_6, %c0_7] : memref<32x64xf32, #tpu.memory_space<vmem>>, vector<32x64xf32>
    %cst_8 = arith.constant dense<0.000000e+00> : vector<32x512xf32>
    %10 = tpu.matmul %9, %8, %cst_8 {dimension_numbers = #tpu.dot_dimension_numbers<[1], [0], [0], [1], [0, 0, 1, 1], [], []>} : vector<32x64xf32>, vector<64x512xf32>, vector<32x512xf32> -> vector<32x512xf32>
    %c0_9 = arith.constant 0 : index
    %c0_10 = arith.constant 0 : index
    %11 = vector.load %arg5[%c0_9, %c0_10] : memref<32x1xf32, #tpu.memory_space<vmem>>, vector<32x1xf32>
    %12 = vector.broadcast %11 : vector<32x1xf32> to vector<32x512xf32>
    %13 = arith.addf %10, %12 : vector<32x512xf32>
    %cst_11 = arith.constant 0.000000e+00 : f32
    %14 = vector.broadcast %cst_11 : f32 to vector<32x512xf32>
    %15 = arith.maximumf %13, %14 : vector<32x512xf32>
    %c0_12 = arith.constant 0 : index
    %c0_13 = arith.constant 0 : index
    %16 = vector.load %arg6[%c0_12, %c0_13] : memref<3x32xf32, #tpu.memory_space<vmem>>, vector<3x32xf32>
    %cst_14 = arith.constant dense<0.000000e+00> : vector<3x512xf32>
    %17 = tpu.matmul %16, %15, %cst_14 {dimension_numbers = #tpu.dot_dimension_numbers<[1], [0], [0], [1], [0, 0, 1, 1], [], []>} : vector<3x32xf32>, vector<32x512xf32>, vector<3x512xf32> -> vector<3x512xf32>
    %c0_15 = arith.constant 0 : index
    %c0_16 = arith.constant 0 : index
    %18 = vector.load %arg7[%c0_15, %c0_16] : memref<3x1xf32, #tpu.memory_space<vmem>>, vector<3x1xf32>
    %19 = vector.broadcast %18 : vector<3x1xf32> to vector<3x512xf32>
    %20 = arith.addf %17, %19 : vector<3x512xf32>
    %c0_17 = arith.constant 0 : index
    %c0_18 = arith.constant 0 : index
    %21 = vector.load %arg8[%c0_17, %c0_18] : memref<3x512xf32, #tpu.memory_space<vmem>>, vector<3x512xf32>
    tpu.vector_store %arg8[%c0_17, %c0_18], %20 {strides = array<i32>} : memref<3x512xf32, #tpu.memory_space<vmem>>, vector<3x512xf32>,
    return
  }
  func.func @transform_0(%arg0: i32) -> (i32, i32) {
    %c0_i32 = arith.constant 0 : i32
    %c0_i32_0 = arith.constant 0 : i32
    return %arg0, %c0_i32 : i32, i32
  }
  func.func @transform_1(%arg0: i32) -> (i32, i32) {
    %c0_i32 = arith.constant 0 : i32
    %c0_i32_0 = arith.constant 0 : i32
    %c0_i32_1 = arith.constant 0 : i32
    return %c0_i32, %c0_i32_0 : i32, i32
  }
  func.func @transform_2(%arg0: i32) -> (i32, i32) {
    %c0_i32 = arith.constant 0 : i32
    %c0_i32_0 = arith.constant 0 : i32
    %c0_i32_1 = arith.constant 0 : i32
    return %c0_i32, %c0_i32_0 : i32, i32
  }
  func.func @transform_3(%arg0: i32) -> (i32, i32) {
    %c0_i32 = arith.constant 0 : i32
    %c0_i32_0 = arith.constant 0 : i32
    %c0_i32_1 = arith.constant 0 : i32
    return %c0_i32, %c0_i32_0 : i32, i32
  }
  func.func @transform_4(%arg0: i32) -> (i32, i32) {
    %c0_i32 = arith.constant 0 : i32
    %c0_i32_0 = arith.constant 0 : i32
    %c0_i32_1 = arith.constant 0 : i32
    return %c0_i32, %c0_i32_0 : i32, i32
  }
  func.func @transform_5(%arg0: i32) -> (i32, i32) {
    %c0_i32 = arith.constant 0 : i32
    %c0_i32_0 = arith.constant 0 : i32
    %c0_i32_1 = arith.constant 0 : i32
    return %c0_i32, %c0_i32_0 : i32, i32
  }
  func.func @transform_6(%arg0: i32) -> (i32, i32) {
    %c0_i32 = arith.constant 0 : i32
    %c0_i32_0 = arith.constant 0 : i32
    %c0_i32_1 = arith.constant 0 : i32
    return %c0_i32, %c0_i32_0 : i32, i32
  }
  func.func @transform_7(%arg0: i32) -> (i32, i32) {
    %c0_i32 = arith.constant 0 : i32
    %c0_i32_0 = arith.constant 0 : i32
    return %c0_i32, %arg0 : i32, i32
  }
}

</mosaic_0001>

<llo_original>
// kernel: tpu_custom_call.1
$region0: #{tpu_custom_call.1}
  #allocation0 [shape = 'u32[]', space=smem, size = 0x4, offset = 0x4, fixed_abs, tag = 'smem constant byte address 0x4 - core index']
  #allocation1 [shape = 'u32[144,128]{1,0:T(1,128)}', space=vmem, size = 0x12000, scoped, tag = 'internal scratch']
  %s0 = inlined_call_operand.vmem [shape: f32[200,9], index: 0, kind: input, shape index: {}]
  %s1 = inlined_call_operand.vmem [shape: f32[64,9], index: 1, kind: input, shape index: {}]
  %s2 = inlined_call_operand.vmem [shape: f32[64,1], index: 2, kind: input, shape index: {}]
  %s3 = inlined_call_operand.vmem [shape: f32[32,64], index: 3, kind: input, shape index: {}]
  %s4 = inlined_call_operand.vmem [shape: f32[32,1], index: 4, kind: input, shape index: {}]
  %s5 = inlined_call_operand.vmem [shape: f32[3,32], index: 5, kind: input, shape index: {}]
  %s6 = inlined_call_operand.vmem [shape: f32[3,1], index: 6, kind: input, shape index: {}]
  %s7 = inlined_call_operand.hbm [shape: f32[3,200], index: 7, kind: output, shape index: {}]
  %s8 = sld [smem:[#allocation0]]
  $region38: #{tpu_custom_call.1} parent=0
    _
  %s10 = ssub.s32 1, %s8
  %s11 = scalar_select 0, %s10, %s8
  $region1: #{tpu_custom_call.1} parent=0
    #allocation2 [shape = 'u8[8192]{0}', space=vmem, size = 0x2000, scoped, tag = 'output window, operand 0, single buffered']
    #allocation3 [shape = 's32[1]{0}', space=sflag, size = 0x4, scoped, tag = 'scoped memory for tpu_custom_call.1']
    %12 = vsyncpa [#allocation3], 0
    // Predicated region
    $region2: #{tpu_custom_call.1} parent=1 // pred_check
      _
    $region3: #{tpu_custom_call.1} parent=1 // pred_check_branch
      %14 = sbr.rel (0) target = $region5
    $region4: #{tpu_custom_call.1} parent=1 // pred_region
      _
    $region5: #{tpu_custom_call.1} parent=1 // pred_fallthru
      _
    // Predicated region
    $region6: #{tpu_custom_call.1} parent=1 // pred_check
      _
    $region7: #{tpu_custom_call.1} parent=1 // pred_check_branch
      %16 = sbr.rel (0) target = $region9
    $region8: #{tpu_custom_call.1} parent=1 // pred_region
      _
    $region9: #{tpu_custom_call.1} parent=1 // pred_fallthru
      _
    // Predicated region
    $region10: #{tpu_custom_call.1} parent=1 // pred_check
      _
    $region11: #{tpu_custom_call.1} parent=1 // pred_check_branch
      %18 = sbr.rel (0) target = $region13
    $region12: #{tpu_custom_call.1} parent=1 // pred_region
      _
    $region13: #{tpu_custom_call.1} parent=1 // pred_fallthru
      _
    // Predicated region
    $region14: #{tpu_custom_call.1} parent=1 // pred_check
      _
    $region15: #{tpu_custom_call.1} parent=1 // pred_check_branch
      %20 = sbr.rel (0) target = $region17
    $region16: #{tpu_custom_call.1} parent=1 // pred_region
      _
    $region17: #{tpu_custom_call.1} parent=1 // pred_fallthru
      _
    // Predicated region
    $region18: #{tpu_custom_call.1} parent=1 // pred_check
      _
    $region19: #{tpu_custom_call.1} parent=1 // pred_check_branch
      %22 = sbr.rel (0) target = $region21
    $region20: #{tpu_custom_call.1} parent=1 // pred_region
      _
    $region21: #{tpu_custom_call.1} parent=1 // pred_fallthru
      _
    // Predicated region
    $region22: #{tpu_custom_call.1} parent=1 // pred_check
      _
    $region23: #{tpu_custom_call.1} parent=1 // pred_check_branch
      %24 = sbr.rel (0) target = $region25
    $region24: #{tpu_custom_call.1} parent=1 // pred_region
      _
    $region25: #{tpu_custom_call.1} parent=1 // pred_fallthru
      _
    // Predicated region
    $region26: #{tpu_custom_call.1} parent=1 // pred_check
      _
    $region27: #{tpu_custom_call.1} parent=1 // pred_check_branch
      %26 = sbr.rel (0) target = $region29
    $region28: #{tpu_custom_call.1} parent=1 // pred_region
      _
    $region29: #{tpu_custom_call.1} parent=1 // pred_fallthru
      _
    %v27 = vld [vmem:[%s0] sm:$0xff]
    %v28 = vld [vmem:[%s0 + $0x8] sm:$0xff]
    %v29 = vld [vmem:[%s0 + $0x10] sm:$0xff]
    %v30 = vld [vmem:[%s0 + $0x18] sm:$0xff]
    %v31 = vld [vmem:[%s0 + $0x20] sm:$0xff]
    %v32 = vld [vmem:[%s0 + $0x28] sm:$0xff]
    %v33 = vld [vmem:[%s0 + $0x30] sm:$0xff]
    %v34 = vld [vmem:[%s0 + $0x38] sm:$0xff]
    %v35 = vld [vmem:[%s0 + $0x40] sm:$0xff]
    %v36 = vld [vmem:[%s0 + $0x48] sm:$0xff]
    %v37 = vld [vmem:[%s0 + $0x50] sm:$0xff]
    %v38 = vld [vmem:[%s0 + $0x58] sm:$0xff]
    %v39 = vld [vmem:[%s0 + $0x60] sm:$0xff]
    %v40 = vld [vmem:[%s0 + $0x68] sm:$0xff]
    %v41 = vld [vmem:[%s0 + $0x70] sm:$0xff]
    %v42 = vld [vmem:[%s0 + $0x78] sm:$0xff]
    %v43 = vld [vmem:[%s0 + $0x80] sm:$0xff]
    %v44 = vld [vmem:[%s0 + $0x88] sm:$0xff]
    %v45 = vld [vmem:[%s0 + $0x90] sm:$0xff]
    %v46 = vld [vmem:[%s0 + $0x98] sm:$0xff]
    %v47 = vld [vmem:[%s0 + $0xa0] sm:$0xff]
    %v48 = vld [vmem:[%s0 + $0xa8] sm:$0xff]
    %v49 = vld [vmem:[%s0 + $0xb0] sm:$0xff]
    %v50 = vld [vmem:[%s0 + $0xb8] sm:$0xff]
    %v51 = vld [vmem:[%s0 + $0xc0] sm:$0xff]
    %v52 = vld [vmem:[%s0 + $0xc8] sm:$0xff]
    %v53 = vld [vmem:[%s0 + $0xd0] sm:$0xff]
    %v54 = vld [vmem:[%s0 + $0xd8] sm:$0xff]
    %v55 = vld [vmem:[%s0 + $0xe0] sm:$0xff]
    %v56 = vld [vmem:[%s0 + $0xe8] sm:$0xff]
    %v57 = vld [vmem:[%s0 + $0xf0] sm:$0xff]
    %v58 = vld [vmem:[%s0 + $0xf8] sm:$0xff]
    %v59 = vld [vmem:[%s0 + $0x100] sm:$0xff]
    %v60 = vld [vmem:[%s0 + $0x108] sm:$0xff]
    %v61 = vld [vmem:[%s0 + $0x110] sm:$0xff]
    %v62 = vld [vmem:[%s0 + $0x118] sm:$0xff]
    %v63 = vld [vmem:[%s0 + $0x120] sm:$0xff]
    %v64 = vld [vmem:[%s0 + $0x128] sm:$0xff]
    %v65 = vld [vmem:[%s0 + $0x130] sm:$0xff]
    %v66 = vld [vmem:[%s0 + $0x138] sm:$0xff]
    %v67 = vld [vmem:[%s0 + $0x140] sm:$0xff]
    %v68 = vld [vmem:[%s0 + $0x148] sm:$0xff]
    %v69 = vld [vmem:[%s0 + $0x150] sm:$0xff]
    %v70 = vld [vmem:[%s0 + $0x158] sm:$0xff]
    %v71 = vld [vmem:[%s0 + $0x160] sm:$0xff]
    %v72 = vld [vmem:[%s0 + $0x168] sm:$0xff]
    %v73 = vld [vmem:[%s0 + $0x170] sm:$0xff]
    %v74 = vld [vmem:[%s0 + $0x178] sm:$0xff]
    %v75 = vld [vmem:[%s0 + $0x180] sm:$0xff]
    %v76 = vld [vmem:[%s0 + $0x188] sm:$0xff]
    %v77 = vld [vmem:[%s0 + $0x190] sm:$0xff]
    %v78 = vld [vmem:[%s0 + $0x198] sm:$0xff]
    %v79 = vld [vmem:[%s0 + $0x1a0] sm:$0xff]
    %v80 = vld [vmem:[%s0 + $0x1a8] sm:$0xff]
    %v81 = vld [vmem:[%s0 + $0x1b0] sm:$0xff]
    %v82 = vld [vmem:[%s0 + $0x1b8] sm:$0xff]
    %v83 = vld [vmem:[%s0 + $0x1c0] sm:$0xff]
    %v84 = vld [vmem:[%s0 + $0x1c8] sm:$0xff]
    %v85 = vld [vmem:[%s0 + $0x1d0] sm:$0xff]
    %v86 = vld [vmem:[%s0 + $0x1d8] sm:$0xff]
    %v87 = vld [vmem:[%s0 + $0x1e0] sm:$0xff]
    %v88 = vld [vmem:[%s0 + $0x1e8] sm:$0xff]
    %v89 = vld [vmem:[%s0 + $0x1f0] sm:$0xff]
    %v90 = vld [vmem:[%s0 + $0x1f8] sm:$0xff]
    %v91 = vld [vmem:[%s1] sm:$0xff]
    %v92 = vld [vmem:[%s1 + $0x8] sm:$0xff]
    %v93 = vld [vmem:[%s1 + $0x10] sm:$0xff]
    %v94 = vld [vmem:[%s1 + $0x18] sm:$0xff]
    %v95 = vld [vmem:[%s1 + $0x20] sm:$0xff]
    %v96 = vld [vmem:[%s1 + $0x28] sm:$0xff]
    %v97 = vld [vmem:[%s1 + $0x30] sm:$0xff]
    %v98 = vld [vmem:[%s1 + $0x38] sm:$0xff]
    %v99 = vld [vmem:[%s2] sm:$0xff]
    %v100 = vld [vmem:[%s2 + $0x8] sm:$0xff]
    %v101 = vld [vmem:[%s2 + $0x10] sm:$0xff]
    %v102 = vld [vmem:[%s2 + $0x18] sm:$0xff]
    %v103 = vld [vmem:[%s2 + $0x20] sm:$0xff]
    %v104 = vld [vmem:[%s2 + $0x28] sm:$0xff]
    %v105 = vld [vmem:[%s2 + $0x30] sm:$0xff]
    %v106 = vld [vmem:[%s2 + $0x38] sm:$0xff]
    %108 = vset.pattern.permute.xlu0 0
    %109 = vperm.xlu0 %108, %v99
    %v110 = vpop.permute.xlu0 %109
    %113 = vset.pattern.permute.xlu0 0
    %114 = vperm.xlu0 %113, %v100
    %v115 = vpop.permute.xlu0 %114
    %118 = vset.pattern.permute.xlu0 0
    %119 = vperm.xlu0 %118, %v101
    %v120 = vpop.permute.xlu0 %119
    %123 = vset.pattern.permute.xlu0 0
    %124 = vperm.xlu0 %123, %v102
    %v125 = vpop.permute.xlu0 %124
    %128 = vset.pattern.permute.xlu0 0
    %129 = vperm.xlu0 %128, %v103
    %v130 = vpop.permute.xlu0 %129
    %133 = vset.pattern.permute.xlu0 0
    %134 = vperm.xlu0 %133, %v104
    %v135 = vpop.permute.xlu0 %134
    %138 = vset.pattern.permute.xlu0 0
    %139 = vperm.xlu0 %138, %v105
    %v140 = vpop.permute.xlu0 %139
    %143 = vset.pattern.permute.xlu0 0
    %144 = vperm.xlu0 %143, %v106
    %v145 = vpop.permute.xlu0 %144
    %vm147 = vcmask 72704
    %v149 = vsel %vm147, %v91, 0
    %v152 = vsel %vm147, %v92, 0
    %v155 = vsel %vm147, %v93, 0
    %v158 = vsel %vm147, %v94, 0
    %v161 = vsel %vm147, %v95, 0
    %v164 = vsel %vm147, %v96, 0
    %v167 = vsel %vm147, %v97, 0
    %v170 = vsel %vm147, %v98, 0
    %v173 = vsel %vm147, %v27, 0
    %v176 = vsel %vm147, %v28, 0
    %v179 = vsel %vm147, %v29, 0
    %v182 = vsel %vm147, %v30, 0
    %v185 = vsel %vm147, %v31, 0
    %v188 = vsel %vm147, %v32, 0
    %v191 = vsel %vm147, %v33, 0
    %v194 = vsel %vm147, %v34, 0
    %v197 = vsel %vm147, %v35, 0
    %v200 = vsel %vm147, %v36, 0
    %v203 = vsel %vm147, %v37, 0
    %v206 = vsel %vm147, %v38, 0
    %v209 = vsel %vm147, %v39, 0
    %v212 = vsel %vm147, %v40, 0
    %v215 = vsel %vm147, %v41, 0
    %v218 = vsel %vm147, %v42, 0
    %v221 = vsel %vm147, %v43, 0
    %v224 = vsel %vm147, %v44, 0
    %v227 = vsel %vm147, %v45, 0
    %v230 = vsel %vm147, %v46, 0
    %v233 = vsel %vm147, %v47, 0
    %v236 = vsel %vm147, %v48, 0
    %v239 = vsel %vm147, %v49, 0
    %v242 = vsel %vm147, %v50, 0
    %v245 = vsel %vm147, %v51, 0
    %v248 = vsel %vm147, %v52, 0
    %v251 = vsel %vm147, %v53, 0
    %v254 = vsel %vm147, %v54, 0
    %v257 = vsel %vm147, %v55, 0
    %v260 = vsel %vm147, %v56, 0
    %v263 = vsel %vm147, %v57, 0
    %v266 = vsel %vm147, %v58, 0
    %v269 = vsel %vm147, %v59, 0
    %v272 = vsel %vm147, %v60, 0
    %v275 = vsel %vm147, %v61, 0
    %v278 = vsel %vm147, %v62, 0
    %v281 = vsel %vm147, %v63, 0
    %v284 = vsel %vm147, %v64, 0
    %v287 = vsel %vm147, %v65, 0
    %v290 = vsel %vm147, %v66, 0
    %v293 = vsel %vm147, %v67, 0
    %v296 = vsel %vm147, %v68, 0
    %v299 = vsel %vm147, %v69, 0
    %v302 = vsel %vm147, %v70, 0
    %v305 = vsel %vm147, %v71, 0
    %v308 = vsel %vm147, %v72, 0
    %v311 = vsel %vm147, %v73, 0
    %v314 = vsel %vm147, %v74, 0
    %v317 = vsel %vm147, %v75, 0
    %v320 = vsel %vm147, %v76, 0
    %v323 = vsel %vm147, %v77, 0
    %v326 = vsel %vm147, %v78, 0
    %v329 = vsel %vm147, %v79, 0
    %v332 = vsel %vm147, %v80, 0
    %v335 = vsel %vm147, %v81, 0
    %v338 = vsel %vm147, %v82, 0
    %v341 = vsel %vm147, %v83, 0
    %v344 = vsel %vm147, %v84, 0
    %v347 = vsel %vm147, %v85, 0
    %v350 = vsel %vm147, %v86, 0
    %v353 = vsel %vm147, %v87, 0
    %v356 = vsel %vm147, %v88, 0
    %v359 = vsel %vm147, %v89, 0
    %v362 = vsel %vm147, %v90, 0
    %364 = vmatprep.subr.mxu0 0.0
    %365 = vmatpush1.xpose.msra.mxu0 %v173
    %366 = vmatprep.subr.mxu0 0.0
    %367 = vmatpush1.xpose.msra.mxu0 %v176
    %368 = vmatprep.subr.mxu0 0.0
    %369 = vmatpush1.xpose.msra.mxu0 %v179
    %370 = vmatprep.subr.mxu0 0.0
    %371 = vmatpush1.xpose.msra.mxu0 %v182
    %372 = vmatprep.subr.mxu0 0.0
    %373 = vmatpush1.xpose.msra.mxu0 %v185
    %374 = vmatprep.subr.mxu0 0.0
    %375 = vmatpush1.xpose.msra.mxu0 %v188
    %376 = vmatprep.subr.mxu0 0.0
    %377 = vmatpush1.xpose.msra.mxu0 %v191
    %378 = vmatprep.subr.mxu0 0.0
    %379 = vmatpush1.xpose.msra.mxu0 %v194
    %380 = vmatprep.subr.mxu0 0.0
    %381 = vmatpush1.xpose.msra.mxu0 %v197
    %382 = vmatprep.subr.mxu0 0.0
    %383 = vmatpush1.xpose.msra.mxu0 %v200
    %384 = vmatprep.subr.mxu0 0.0
    %385 = vmatpush1.xpose.msra.mxu0 %v203
    %386 = vmatprep.subr.mxu0 0.0
    %387 = vmatpush1.xpose.msra.mxu0 %v206
    %388 = vmatprep.subr.mxu0 0.0
    %389 = vmatpush1.xpose.msra.mxu0 %v209
    %390 = vmatprep.subr.mxu0 0.0
    %391 = vmatpush1.xpose.msra.mxu0 %v212
    %392 = vmatprep.subr.mxu0 0.0
    %393 = vmatpush1.xpose.msra.mxu0 %v215
    %394 = vmatprep.subr.mxu0 0.0
    %395 = vmatpush1.xpose.msra.mxu0 %v218
    %396 = vmatprep.subr.mxu0 0.0
    %397 = vmatpush1.xpose.msra.mxu0 %v221
    %398 = vmatprep.subr.mxu0 0.0
    %399 = vmatpush1.xpose.msra.mxu0 %v224
    %400 = vmatprep.subr.mxu0 0.0
    %401 = vmatpush1.xpose.msra.mxu0 %v227
    %402 = vmatprep.subr.mxu0 0.0
    %403 = vmatpush1.xpose.msra.mxu0 %v230
    %404 = vmatprep.subr.mxu0 0.0
    %405 = vmatpush1.xpose.msra.mxu0 %v233
    %406 = vmatprep.subr.mxu0 0.0
    %407 = vmatpush1.xpose.msra.mxu0 %v236
    %408 = vmatprep.subr.mxu0 0.0
    %409 = vmatpush1.xpose.msra.mxu0 %v239
    %410 = vmatprep.subr.mxu0 0.0
    %411 = vmatpush1.xpose.msra.mxu0 %v242
    %412 = vmatprep.subr.mxu0 0.0
    %413 = vmatpush1.xpose.msra.mxu0 %v245
    %414 = vmatprep.subr.mxu0 0.0
    %415 = vmatpush1.xpose.msra.mxu0 %v248
    %416 = vmatprep.subr.mxu0 0.0
    %417 = vmatpush1.xpose.msra.mxu0 %v251
    %418 = vmatprep.subr.mxu0 0.0
    %419 = vmatpush1.xpose.msra.mxu0 %v254
    %420 = vmatprep.subr.mxu0 0.0
    %421 = vmatpush1.xpose.msra.mxu0 %v257
    %422 = vmatprep.subr.mxu0 0.0
    %423 = vmatpush1.xpose.msra.mxu0 %v260
    %424 = vmatprep.subr.mxu0 0.0
    %425 = vmatpush1.xpose.msra.mxu0 %v263
    %426 = vmatprep.subr.mxu0 0.0
    %427 = vmatpush1.xpose.msra.mxu0 %v266
    %428 = vmatprep.mubr.f32.mxu0 0.0
    %429 = vmatmul.mubr.f32.gmra.mrb[0].mxu0 %v149
    %v430 = vpop.f32.mrb[0].mxu0
    %v431 = vadd.f32 %v110, %v430
    %v432 = vpop.f32.mrb[0].mxu0
    %v433 = vadd.f32 %v110, %v432
    %434 = vmatprep.mubr.f32.mxu0 0.0
    %435 = vmatmul.mubr.f32.gmra.mrb[0].mxu0 %v152
    %v436 = vpop.f32.mrb[0].mxu0
    %v437 = vadd.f32 %v115, %v436
    %v438 = vpop.f32.mrb[0].mxu0
    %v439 = vadd.f32 %v115, %v438
    %440 = vmatprep.mubr.f32.mxu0 0.0
    %441 = vmatmul.mubr.f32.gmra.mrb[0].mxu0 %v155
    %v442 = vpop.f32.mrb[0].mxu0
    %v443 = vadd.f32 %v120, %v442
    %v444 = vpop.f32.mrb[0].mxu0
    %v445 = vadd.f32 %v120, %v444
    %446 = vmatprep.mubr.f32.mxu0 0.0
    %447 = vmatmul.mubr.f32.gmra.mrb[0].mxu0 %v158
    %v448 = vpop.f32.mrb[0].mxu0
    %v449 = vadd.f32 %v125, %v448
    %v450 = vpop.f32.mrb[0].mxu0
    %v451 = vadd.f32 %v125, %v450
    %452 = vmatprep.mubr.f32.mxu0 0.0
    %453 = vmatmul.mubr.f32.gmra.mrb[0].mxu0 %v161
    %v454 = vpop.f32.mrb[0].mxu0
    %v455 = vadd.f32 %v130, %v454
    %v456 = vpop.f32.mrb[0].mxu0
    %v457 = vadd.f32 %v130, %v456
    %458 = vmatprep.mubr.f32.mxu0 0.0
    %459 = vmatmul.mubr.f32.gmra.mrb[0].mxu0 %v164
    %v460 = vpop.f32.mrb[0].mxu0
    %v461 = vadd.f32 %v135, %v460
    %v462 = vpop.f32.mrb[0].mxu0
    %v463 = vadd.f32 %v135, %v462
    %464 = vmatprep.mubr.f32.mxu0 0.0
    %465 = vmatmul.mubr.f32.gmra.mrb[0].mxu0 %v167
    %v466 = vpop.f32.mrb[0].mxu0
    %v467 = vadd.f32 %v140, %v466
    %v468 = vpop.f32.mrb[0].mxu0
    %v469 = vadd.f32 %v140, %v468
    %470 = vmatprep.mubr.f32.mxu0 0.0
    %471 = vmatmul.mubr.f32.gmra.mrb[0].mxu0 %v170
    %v472 = vpop.f32.mrb[0].mxu0
    %v473 = vadd.f32 %v145, %v472
    %v474 = vpop.f32.mrb[0].mxu0
    %v475 = vadd.f32 %v145, %v474
    %476 = vdwg.mxu0
    %477 = vmatprep.subr.mxu0 0.0
    %478 = vmatpush1.xpose.msra.mxu0 %v269
    %479 = vmatprep.subr.mxu0 0.0
    %480 = vmatpush1.xpose.msra.mxu0 %v272
    %481 = vmatprep.subr.mxu0 0.0
    %482 = vmatpush1.xpose.msra.mxu0 %v275
    %483 = vmatprep.subr.mxu0 0.0
    %484 = vmatpush1.xpose.msra.mxu0 %v278
    %485 = vmatprep.subr.mxu0 0.0
    %486 = vmatpush1.xpose.msra.mxu0 %v281
    %487 = vmatprep.subr.mxu0 0.0
    %488 = vmatpush1.xpose.msra.mxu0 %v284
    %489 = vmatprep.subr.mxu0 0.0
    %490 = vmatpush1.xpose.msra.mxu0 %v287
    %491 = vmatprep.subr.mxu0 0.0
    %492 = vmatpush1.xpose.msra.mxu0 %v290
    %493 = vmatprep.subr.mxu0 0.0
    %494 = vmatpush1.xpose.msra.mxu0 %v293
    %495 = vmatprep.subr.mxu0 0.0
    %496 = vmatpush1.xpose.msra.mxu0 %v296
    %497 = vmatprep.subr.mxu0 0.0
    %498 = vmatpush1.xpose.msra.mxu0 %v299
    %499 = vmatprep.subr.mxu0 0.0
    %500 = vmatpush1.xpose.msra.mxu0 %v302
    %501 = vmatprep.subr.mxu0 0.0
    %502 = vmatpush1.xpose.msra.mxu0 %v305
    %503 = vmatprep.subr.mxu0 0.0
    %504 = vmatpush1.xpose.msra.mxu0 %v308
    %505 = vmatprep.subr.mxu0 0.0
    %506 = vmatpush1.xpose.msra.mxu0 %v311
    %507 = vmatprep.subr.mxu0 0.0
    %508 = vmatpush1.xpose.msra.mxu0 %v314
    %509 = vmatprep.subr.mxu0 0.0
    %510 = vmatpush1.xpose.msra.mxu0 %v317
    %511 = vmatprep.subr.mxu0 0.0
    %512 = vmatpush1.xpose.msra.mxu0 %v320
    %513 = vmatprep.subr.mxu0 0.0
    %514 = vmatpush1.xpose.msra.mxu0 %v323
    %515 = vmatprep.subr.mxu0 0.0
    %516 = vmatpush1.xpose.msra.mxu0 %v326
    %517 = vmatprep.subr.mxu0 0.0
    %518 = vmatpush1.xpose.msra.mxu0 %v329
    %519 = vmatprep.subr.mxu0 0.0
    %520 = vmatpush1.xpose.msra.mxu0 %v332
    %521 = vmatprep.subr.mxu0 0.0
    %522 = vmatpush1.xpose.msra.mxu0 %v335
    %523 = vmatprep.subr.mxu0 0.0
    %524 = vmatpush1.xpose.msra.mxu0 %v338
    %525 = vmatprep.subr.mxu0 0.0
    %526 = vmatpush1.xpose.msra.mxu0 %v341
    %527 = vmatprep.subr.mxu0 0.0
    %528 = vmatpush1.xpose.msra.mxu0 %v344
    %529 = vmatprep.subr.mxu0 0.0
    %530 = vmatpush1.xpose.msra.mxu0 %v347
    %531 = vmatprep.subr.mxu0 0.0
    %532 = vmatpush1.xpose.msra.mxu0 %v350
    %533 = vmatprep.subr.mxu0 0.0
    %534 = vmatpush1.xpose.msra.mxu0 %v353
    %535 = vmatprep.subr.mxu0 0.0
    %536 = vmatpush1.xpose.msra.mxu0 %v356
    %537 = vmatprep.subr.mxu0 0.0
    %538 = vmatpush1.xpose.msra.mxu0 %v359
    %539 = vmatprep.subr.mxu0 0.0
    %540 = vmatpush1.xpose.msra.mxu0 %v362
    %541 = vmatprep.mubr.f32.mxu0 0.0
    %542 = vmatmul.mubr.f32.gmra.mrb[0].mxu0 %v149
    %v543 = vpop.f32.mrb[0].mxu0
    %v544 = vadd.f32 %v110, %v543
    %v545 = vpop.f32.mrb[0].mxu0
    %v546 = vadd.f32 %v110, %v545
    %547 = vmatprep.mubr.f32.mxu0 0.0
    %548 = vmatmul.mubr.f32.gmra.mrb[0].mxu0 %v152
    %v549 = vpop.f32.mrb[0].mxu0
    %v550 = vadd.f32 %v115, %v549
    %v551 = vpop.f32.mrb[0].mxu0
    %v552 = vadd.f32 %v115, %v551
    %553 = vmatprep.mubr.f32.mxu0 0.0
    %554 = vmatmul.mubr.f32.gmra.mrb[0].mxu0 %v155
    %v555 = vpop.f32.mrb[0].mxu0
    %v556 = vadd.f32 %v120, %v555
    %v557 = vpop.f32.mrb[0].mxu0
    %v558 = vadd.f32 %v120, %v557
    %559 = vmatprep.mubr.f32.mxu0 0.0
    %560 = vmatmul.mubr.f32.gmra.mrb[0].mxu0 %v158
    %v561 = vpop.f32.mrb[0].mxu0
    %v562 = vadd.f32 %v125, %v561
    %v563 = vpop.f32.mrb[0].mxu0
    %v564 = vadd.f32 %v125, %v563
    %565 = vmatprep.mubr.f32.mxu0 0.0
    %566 = vmatmul.mubr.f32.gmra.mrb[0].mxu0 %v161
    %v567 = vpop.f32.mrb[0].mxu0
    %v568 = vadd.f32 %v130, %v567
    %v569 = vpop.f32.mrb[0].mxu0
    %v570 = vadd.f32 %v130, %v569
    %571 = vmatprep.mubr.f32.mxu0 0.0
    %572 = vmatmul.mubr.f32.gmra.mrb[0].mxu0 %v164
    %v573 = vpop.f32.mrb[0].mxu0
    %v574 = vadd.f32 %v135, %v573
    %v575 = vpop.f32.mrb[0].mxu0
    %v576 = vadd.f32 %v135, %v575
    %577 = vmatprep.mubr.f32.mxu0 0.0
    %578 = vmatmul.mubr.f32.gmra.mrb[0].mxu0 %v167
    %v579 = vpop.f32.mrb[0].mxu0
    %v580 = vadd.f32 %v140, %v579
    %v581 = vpop.f32.mrb[0].mxu0
    %v582 = vadd.f32 %v140, %v581
    %583 = vmatprep.mubr.f32.mxu0 0.0
    %584 = vmatmul.mubr.f32.gmra.mrb[0].mxu0 %v170
    %v585 = vpop.f32.mrb[0].mxu0
    %v586 = vadd.f32 %v145, %v585
    %v587 = vpop.f32.mrb[0].mxu0
    %v588 = vadd.f32 %v145, %v587
    %589 = vdwg.mxu0
    %v590 = vmax.f32 %v431, 0.0
    %v591 = vmax.f32 %v433, 0.0
    %v592 = vmax.f32 %v544, 0.0
    %v593 = vmax.f32 %v546, 0.0
    %v594 = vmax.f32 %v437, 0.0
    %v595 = vmax.f32 %v439, 0.0
    %v596 = vmax.f32 %v550, 0.0
    %v597 = vmax.f32 %v552, 0.0
    %v598 = vmax.f32 %v443, 0.0
    %v599 = vmax.f32 %v445, 0.0
    %v600 = vmax.f32 %v556, 0.0
    %v601 = vmax.f32 %v558, 0.0
    %v602 = vmax.f32 %v449, 0.0
    %v603 = vmax.f32 %v451, 0.0
    %v604 = vmax.f32 %v562, 0.0
    %v605 = vmax.f32 %v564, 0.0
    %v606 = vmax.f32 %v455, 0.0
    %v607 = vmax.f32 %v457, 0.0
    %v608 = vmax.f32 %v568, 0.0
    %v609 = vmax.f32 %v570, 0.0
    %v610 = vmax.f32 %v461, 0.0
    %v611 = vmax.f32 %v463, 0.0
    %v612 = vmax.f32 %v574, 0.0
    %v613 = vmax.f32 %v576, 0.0
    %v614 = vmax.f32 %v467, 0.0
    %v615 = vmax.f32 %v469, 0.0
    %v616 = vmax.f32 %v580, 0.0
    %v617 = vmax.f32 %v582, 0.0
    %v618 = vmax.f32 %v473, 0.0
    %v619 = vmax.f32 %v475, 0.0
    %v620 = vmax.f32 %v586, 0.0
    %v621 = vmax.f32 %v588, 0.0
    %v622 = vld [vmem:[%s3] sm:$0xff]
    %v623 = vld [vmem:[%s3 + $0x8] sm:$0xff]
    %v624 = vld [vmem:[%s3 + $0x10] sm:$0xff]
    %v625 = vld [vmem:[%s3 + $0x18] sm:$0xff]
    %v626 = vld [vmem:[%s4] sm:$0xff]
    %v627 = vld [vmem:[%s4 + $0x8] sm:$0xff]
    %v628 = vld [vmem:[%s4 + $0x10] sm:$0xff]
    %v629 = vld [vmem:[%s4 + $0x18] sm:$0xff]
    %631 = vset.pattern.permute.xlu0 0
    %632 = vperm.xlu0 %631, %v626
    %v633 = vpop.permute.xlu0 %632
    %636 = vset.pattern.permute.xlu0 0
    %637 = vperm.xlu0 %636, %v627
    %v638 = vpop.permute.xlu0 %637
    %641 = vset.pattern.permute.xlu0 0
    %642 = vperm.xlu0 %641, %v628
    %v643 = vpop.permute.xlu0 %642
    %646 = vset.pattern.permute.xlu0 0
    %647 = vperm.xlu0 %646, %v629
    %v648 = vpop.permute.xlu0 %647
    %vm650 = vcmask 523264
    %v652 = vsel %vm650, %v622, 0
    %v655 = vsel %vm650, %v623, 0
    %v658 = vsel %vm650, %v624, 0
    %v661 = vsel %vm650, %v625, 0
    %663 = vmatprep.subr.mxu0 %v591
    %664 = vmatpush1.msra.mxu0 %v590
    %665 = vmatprep.subr.mxu0 %v595
    %666 = vmatpush1.msra.mxu0 %v594
    %667 = vmatprep.subr.mxu0 %v599
    %668 = vmatpush1.msra.mxu0 %v598
    %669 = vmatprep.subr.mxu0 %v603
    %670 = vmatpush1.msra.mxu0 %v602
    %671 = vmatprep.subr.mxu0 %v607
    %672 = vmatpush1.msra.mxu0 %v606
    %673 = vmatprep.subr.mxu0 %v611
    %674 = vmatpush1.msra.mxu0 %v610
    %675 = vmatprep.subr.mxu0 %v615
    %676 = vmatpush1.msra.mxu0 %v614
    %677 = vmatprep.subr.mxu0 %v619
    %678 = vmatpush1.msra.mxu0 %v618
    %679 = vmatprep.subr.mxu0 0.0
    %680 = vmatpush1.msra.mxu0 0.0
    %681 = vmatprep.subr.mxu0 0.0
    %682 = vmatpush1.msra.mxu0 0.0
    %683 = vmatprep.subr.mxu0 0.0
    %684 = vmatpush1.msra.mxu0 0.0
    %685 = vmatprep.subr.mxu0 0.0
    %686 = vmatpush1.msra.mxu0 0.0
    %687 = vmatprep.subr.mxu0 0.0
    %688 = vmatpush1.msra.mxu0 0.0
    %689 = vmatprep.subr.mxu0 0.0
    %690 = vmatpush1.msra.mxu0 0.0
    %691 = vmatprep.subr.mxu0 0.0
    %692 = vmatpush1.msra.mxu0 0.0
    %693 = vmatprep.subr.mxu0 0.0
    %694 = vmatpush1.msra.mxu0 0.0
    %695 = vmatprep.subr.mxu0 0.0
    %696 = vmatpush1.msra.mxu0 0.0
    %697 = vmatprep.subr.mxu0 0.0
    %698 = vmatpush1.msra.mxu0 0.0
    %699 = vmatprep.subr.mxu0 0.0
    %700 = vmatpush1.msra.mxu0 0.0
    %701 = vmatprep.subr.mxu0 0.0
    %702 = vmatpush1.msra.mxu0 0.0
    %703 = vmatprep.subr.mxu0 0.0
    %704 = vmatpush1.msra.mxu0 0.0
    %705 = vmatprep.subr.mxu0 0.0
    %706 = vmatpush1.msra.mxu0 0.0
    %707 = vmatprep.subr.mxu0 0.0
    %708 = vmatpush1.msra.mxu0 0.0
    %709 = vmatprep.subr.mxu0 0.0
    %710 = vmatpush1.msra.mxu0 0.0
    %711 = vmatprep.subr.mxu0 0.0
    %712 = vmatpush1.msra.mxu0 0.0
    %713 = vmatprep.subr.mxu0 0.0
    %714 = vmatpush1.msra.mxu0 0.0
    %715 = vmatprep.subr.mxu0 0.0
    %716 = vmatpush1.msra.mxu0 0.0
    %717 = vmatprep.subr.mxu0 0.0
    %718 = vmatpush1.msra.mxu0 0.0
    %719 = vmatprep.subr.mxu0 0.0
    %720 = vmatpush1.msra.mxu0 0.0
    %721 = vmatprep.subr.mxu0 0.0
    %722 = vmatpush1.msra.mxu0 0.0
    %723 = vmatprep.subr.mxu0 0.0
    %724 = vmatpush1.msra.mxu0 0.0
    %725 = vmatprep.subr.mxu0 0.0
    %726 = vmatpush1.msra.mxu0 0.0
    %727 = vmatprep.mubr.f32.mxu0 0.0
    %728 = vmatmul.mubr.f32.gmra.mrb[0].mxu0 %v652
    %v729 = vpop.f32.mrb[0].mxu0
    %v730 = vadd.f32 %v633, %v729
    %v731 = vpop.f32.mrb[0].mxu0
    %v732 = vadd.f32 %v633, %v731
    %733 = vmatprep.mubr.f32.mxu0 0.0
    %734 = vmatmul.mubr.f32.gmra.mrb[0].mxu0 %v655
    %v735 = vpop.f32.mrb[0].mxu0
    %v736 = vadd.f32 %v638, %v735
    %v737 = vpop.f32.mrb[0].mxu0
    %v738 = vadd.f32 %v638, %v737
    %739 = vmatprep.mubr.f32.mxu0 0.0
    %740 = vmatmul.mubr.f32.gmra.mrb[0].mxu0 %v658
    %v741 = vpop.f32.mrb[0].mxu0
    %v742 = vadd.f32 %v643, %v741
    %v743 = vpop.f32.mrb[0].mxu0
    %v744 = vadd.f32 %v643, %v743
    %745 = vmatprep.mubr.f32.mxu0 0.0
    %746 = vmatmul.mubr.f32.gmra.mrb[0].mxu0 %v661
    %v747 = vpop.f32.mrb[0].mxu0
    %v748 = vadd.f32 %v648, %v747
    %v749 = vpop.f32.mrb[0].mxu0
    %v750 = vadd.f32 %v648, %v749
    %751 = vdwg.mxu0
    %752 = vmatprep.subr.mxu0 %v593
    %753 = vmatpush1.msra.mxu0 %v592
    %754 = vmatprep.subr.mxu0 %v597
    %755 = vmatpush1.msra.mxu0 %v596
    %756 = vmatprep.subr.mxu0 %v601
    %757 = vmatpush1.msra.mxu0 %v600
    %758 = vmatprep.subr.mxu0 %v605
    %759 = vmatpush1.msra.mxu0 %v604
    %760 = vmatprep.subr.mxu0 %v609
    %761 = vmatpush1.msra.mxu0 %v608
    %762 = vmatprep.subr.mxu0 %v613
    %763 = vmatpush1.msra.mxu0 %v612
    %764 = vmatprep.subr.mxu0 %v617
    %765 = vmatpush1.msra.mxu0 %v616
    %766 = vmatprep.subr.mxu0 %v621
    %767 = vmatpush1.msra.mxu0 %v620
    %768 = vmatprep.subr.mxu0 0.0
    %769 = vmatpush1.msra.mxu0 0.0
    %770 = vmatprep.subr.mxu0 0.0
    %771 = vmatpush1.msra.mxu0 0.0
    %772 = vmatprep.subr.mxu0 0.0
    %773 = vmatpush1.msra.mxu0 0.0
    %774 = vmatprep.subr.mxu0 0.0
    %775 = vmatpush1.msra.mxu0 0.0
    %776 = vmatprep.subr.mxu0 0.0
    %777 = vmatpush1.msra.mxu0 0.0
    %778 = vmatprep.subr.mxu0 0.0
    %779 = vmatpush1.msra.mxu0 0.0
    %780 = vmatprep.subr.mxu0 0.0
    %781 = vmatpush1.msra.mxu0 0.0
    %782 = vmatprep.subr.mxu0 0.0
    %783 = vmatpush1.msra.mxu0 0.0
    %784 = vmatprep.subr.mxu0 0.0
    %785 = vmatpush1.msra.mxu0 0.0
    %786 = vmatprep.subr.mxu0 0.0
    %787 = vmatpush1.msra.mxu0 0.0
    %788 = vmatprep.subr.mxu0 0.0
    %789 = vmatpush1.msra.mxu0 0.0
    %790 = vmatprep.subr.mxu0 0.0
    %791 = vmatpush1.msra.mxu0 0.0
    %792 = vmatprep.subr.mxu0 0.0
    %793 = vmatpush1.msra.mxu0 0.0
    %794 = vmatprep.subr.mxu0 0.0
    %795 = vmatpush1.msra.mxu0 0.0
    %796 = vmatprep.subr.mxu0 0.0
    %797 = vmatpush1.msra.mxu0 0.0
    %798 = vmatprep.subr.mxu0 0.0
    %799 = vmatpush1.msra.mxu0 0.0
    %800 = vmatprep.subr.mxu0 0.0
    %801 = vmatpush1.msra.mxu0 0.0
    %802 = vmatprep.subr.mxu0 0.0
    %803 = vmatpush1.msra.mxu0 0.0
    %804 = vmatprep.subr.mxu0 0.0
    %805 = vmatpush1.msra.mxu0 0.0
    %806 = vmatprep.subr.mxu0 0.0
    %807 = vmatpush1.msra.mxu0 0.0
    %808 = vmatprep.subr.mxu0 0.0
    %809 = vmatpush1.msra.mxu0 0.0
    %810 = vmatprep.subr.mxu0 0.0
    %811 = vmatpush1.msra.mxu0 0.0
    %812 = vmatprep.subr.mxu0 0.0
    %813 = vmatpush1.msra.mxu0 0.0
    %814 = vmatprep.subr.mxu0 0.0
    %815 = vmatpush1.msra.mxu0 0.0
    %816 = vmatprep.mubr.f32.mxu0 0.0
    %817 = vmatmul.mubr.f32.gmra.mrb[0].mxu0 %v652
    %v818 = vpop.f32.mrb[0].mxu0
    %v819 = vadd.f32 %v633, %v818
    %v820 = vpop.f32.mrb[0].mxu0
    %v821 = vadd.f32 %v633, %v820
    %822 = vmatprep.mubr.f32.mxu0 0.0
    %823 = vmatmul.mubr.f32.gmra.mrb[0].mxu0 %v655
    %v824 = vpop.f32.mrb[0].mxu0
    %v825 = vadd.f32 %v638, %v824
    %v826 = vpop.f32.mrb[0].mxu0
    %v827 = vadd.f32 %v638, %v826
    %828 = vmatprep.mubr.f32.mxu0 0.0
    %829 = vmatmul.mubr.f32.gmra.mrb[0].mxu0 %v658
    %v830 = vpop.f32.mrb[0].mxu0
    %v831 = vadd.f32 %v643, %v830
    %v832 = vpop.f32.mrb[0].mxu0
    %v833 = vadd.f32 %v643, %v832
    %834 = vmatprep.mubr.f32.mxu0 0.0
    %835 = vmatmul.mubr.f32.gmra.mrb[0].mxu0 %v661
    %v836 = vpop.f32.mrb[0].mxu0
    %v837 = vadd.f32 %v648, %v836
    %v838 = vpop.f32.mrb[0].mxu0
    %v839 = vadd.f32 %v648, %v838
    %840 = vdwg.mxu0
    %v841 = vmax.f32 %v730, 0.0
    %v842 = vmax.f32 %v732, 0.0
    %v843 = vmax.f32 %v819, 0.0
    %v844 = vmax.f32 %v821, 0.0
    %v845 = vmax.f32 %v736, 0.0
    %v846 = vmax.f32 %v738, 0.0
    %v847 = vmax.f32 %v825, 0.0
    %v848 = vmax.f32 %v827, 0.0
    %v849 = vmax.f32 %v742, 0.0
    %v850 = vmax.f32 %v744, 0.0
    %v851 = vmax.f32 %v831, 0.0
    %v852 = vmax.f32 %v833, 0.0
    %v853 = vmax.f32 %v748, 0.0
    %v854 = vmax.f32 %v750, 0.0
    %v855 = vmax.f32 %v837, 0.0
    %v856 = vmax.f32 %v839, 0.0
    %v857 = vld [vmem:[%s5] sm:$0x7]
    %v858 = vld [vmem:[%s6] sm:$0x7]
    %860 = vset.pattern.permute.xlu0 0
    %861 = vperm.xlu0 %860, %v858
    %v862 = vpop.permute.xlu0 %861
    %vm864 = vcmask 261120
    %v866 = vsel %vm864, %v857, 0
    %868 = vmatprep.subr.mxu0 %v842
    %869 = vmatpush1.msra.mxu0 %v841
    %870 = vmatprep.subr.mxu0 %v846
    %871 = vmatpush1.msra.mxu0 %v845
    %872 = vmatprep.subr.mxu0 %v850
    %873 = vmatpush1.msra.mxu0 %v849
    %874 = vmatprep.subr.mxu0 %v854
    %875 = vmatpush1.msra.mxu0 %v853
    %876 = vmatprep.subr.mxu0 0.0
    %877 = vmatpush1.msra.mxu0 0.0
    %878 = vmatprep.subr.mxu0 0.0
    %879 = vmatpush1.msra.mxu0 0.0
    %880 = vmatprep.subr.mxu0 0.0
    %881 = vmatpush1.msra.mxu0 0.0
    %882 = vmatprep.subr.mxu0 0.0
    %883 = vmatpush1.msra.mxu0 0.0
    %884 = vmatprep.subr.mxu0 0.0
    %885 = vmatpush1.msra.mxu0 0.0
    %886 = vmatprep.subr.mxu0 0.0
    %887 = vmatpush1.msra.mxu0 0.0
    %888 = vmatprep.subr.mxu0 0.0
    %889 = vmatpush1.msra.mxu0 0.0
    %890 = vmatprep.subr.mxu0 0.0
    %891 = vmatpush1.msra.mxu0 0.0
    %892 = vmatprep.subr.mxu0 0.0
    %893 = vmatpush1.msra.mxu0 0.0
    %894 = vmatprep.subr.mxu0 0.0
    %895 = vmatpush1.msra.mxu0 0.0
    %896 = vmatprep.subr.mxu0 0.0
    %897 = vmatpush1.msra.mxu0 0.0
    %898 = vmatprep.subr.mxu0 0.0
    %899 = vmatpush1.msra.mxu0 0.0
    %900 = vmatprep.subr.mxu0 0.0
    %901 = vmatpush1.msra.mxu0 0.0
    %902 = vmatprep.subr.mxu0 0.0
    %903 = vmatpush1.msra.mxu0 0.0
    %904 = vmatprep.subr.mxu0 0.0
    %905 = vmatpush1.msra.mxu0 0.0
    %906 = vmatprep.subr.mxu0 0.0
    %907 = vmatpush1.msra.mxu0 0.0
    %908 = vmatprep.subr.mxu0 0.0
    %909 = vmatpush1.msra.mxu0 0.0
    %910 = vmatprep.subr.mxu0 0.0
    %911 = vmatpush1.msra.mxu0 0.0
    %912 = vmatprep.subr.mxu0 0.0
    %913 = vmatpush1.msra.mxu0 0.0
    %914 = vmatprep.subr.mxu0 0.0
    %915 = vmatpush1.msra.mxu0 0.0
    %916 = vmatprep.subr.mxu0 0.0
    %917 = vmatpush1.msra.mxu0 0.0
    %918 = vmatprep.subr.mxu0 0.0
    %919 = vmatpush1.msra.mxu0 0.0
    %920 = vmatprep.subr.mxu0 0.0
    %921 = vmatpush1.msra.mxu0 0.0
    %922 = vmatprep.subr.mxu0 0.0
    %923 = vmatpush1.msra.mxu0 0.0
    %924 = vmatprep.subr.mxu0 0.0
    %925 = vmatpush1.msra.mxu0 0.0
    %926 = vmatprep.subr.mxu0 0.0
    %927 = vmatpush1.msra.mxu0 0.0
    %928 = vmatprep.subr.mxu0 0.0
    %929 = vmatpush1.msra.mxu0 0.0
    %930 = vmatprep.subr.mxu0 0.0
    %931 = vmatpush1.msra.mxu0 0.0
    %932 = vmatprep.mubr.f32.mxu0 0.0
    %933 = vmatmul.mubr.f32.gmra.mrb[0].mxu0 %v866
    %v934 = vpop.f32.mrb[0].mxu0
    %v935 = vadd.f32 %v862, %v934
    %v936 = vpop.f32.mrb[0].mxu0
    %v937 = vadd.f32 %v862, %v936
    %938 = vdwg.mxu0
    %939 = vmatprep.subr.mxu0 %v844
    %940 = vmatpush1.msra.mxu0 %v843
    %941 = vmatprep.subr.mxu0 %v848
    %942 = vmatpush1.msra.mxu0 %v847
    %943 = vmatprep.subr.mxu0 %v852
    %944 = vmatpush1.msra.mxu0 %v851
    %945 = vmatprep.subr.mxu0 %v856
    %946 = vmatpush1.msra.mxu0 %v855
    %947 = vmatprep.subr.mxu0 0.0
    %948 = vmatpush1.msra.mxu0 0.0
    %949 = vmatprep.subr.mxu0 0.0
    %950 = vmatpush1.msra.mxu0 0.0
    %951 = vmatprep.subr.mxu0 0.0
    %952 = vmatpush1.msra.mxu0 0.0
    %953 = vmatprep.subr.mxu0 0.0
    %954 = vmatpush1.msra.mxu0 0.0
    %955 = vmatprep.subr.mxu0 0.0
    %956 = vmatpush1.msra.mxu0 0.0
    %957 = vmatprep.subr.mxu0 0.0
    %958 = vmatpush1.msra.mxu0 0.0
    %959 = vmatprep.subr.mxu0 0.0
    %960 = vmatpush1.msra.mxu0 0.0
    %961 = vmatprep.subr.mxu0 0.0
    %962 = vmatpush1.msra.mxu0 0.0
    %963 = vmatprep.subr.mxu0 0.0
    %964 = vmatpush1.msra.mxu0 0.0
    %965 = vmatprep.subr.mxu0 0.0
    %966 = vmatpush1.msra.mxu0 0.0
    %967 = vmatprep.subr.mxu0 0.0
    %968 = vmatpush1.msra.mxu0 0.0
    %969 = vmatprep.subr.mxu0 0.0
    %970 = vmatpush1.msra.mxu0 0.0
    %971 = vmatprep.subr.mxu0 0.0
    %972 = vmatpush1.msra.mxu0 0.0
    %973 = vmatprep.subr.mxu0 0.0
    %974 = vmatpush1.msra.mxu0 0.0
    %975 = vmatprep.subr.mxu0 0.0
    %976 = vmatpush1.msra.mxu0 0.0
    %977 = vmatprep.subr.mxu0 0.0
    %978 = vmatpush1.msra.mxu0 0.0
    %979 = vmatprep.subr.mxu0 0.0
    %980 = vmatpush1.msra.mxu0 0.0
    %981 = vmatprep.subr.mxu0 0.0
    %982 = vmatpush1.msra.mxu0 0.0
    %983 = vmatprep.subr.mxu0 0.0
    %984 = vmatpush1.msra.mxu0 0.0
    %985 = vmatprep.subr.mxu0 0.0
    %986 = vmatpush1.msra.mxu0 0.0
    %987 = vmatprep.subr.mxu0 0.0
    %988 = vmatpush1.msra.mxu0 0.0
    %989 = vmatprep.subr.mxu0 0.0
    %990 = vmatpush1.msra.mxu0 0.0
    %991 = vmatprep.subr.mxu0 0.0
    %992 = vmatpush1.msra.mxu0 0.0
    %993 = vmatprep.subr.mxu0 0.0
    %994 = vmatpush1.msra.mxu0 0.0
    %995 = vmatprep.subr.mxu0 0.0
    %996 = vmatpush1.msra.mxu0 0.0
    %997 = vmatprep.subr.mxu0 0.0
    %998 = vmatpush1.msra.mxu0 0.0
    %999 = vmatprep.subr.mxu0 0.0
    %1000 = vmatpush1.msra.mxu0 0.0
    %1001 = vmatprep.subr.mxu0 0.0
    %1002 = vmatpush1.msra.mxu0 0.0
    %1003 = vmatprep.mubr.f32.mxu0 0.0
    %1004 = vmatmul.mubr.f32.gmra.mrb[0].mxu0 %v866
    %v1005 = vpop.f32.mrb[0].mxu0
    %v1006 = vadd.f32 %v862, %v1005
    %v1007 = vpop.f32.mrb[0].mxu0
    %v1008 = vadd.f32 %v862, %v1007
    %1009 = vdwg.mxu0
    %v1014 = vcombine.low %v935, %v937
    %v1015 = vcombine.low %v1006, %v1008
    %1018 = vst [vmem:[#allocation2] sm:$0x77] %v1014
    %1019 = vst [vmem:[#allocation2 + $0x8] sm:$0x77] %v1015
    // Predicated region
    $region30: #{tpu_custom_call.1} parent=1 // pred_check
      _
    $region31: #{tpu_custom_call.1} parent=1 // pred_check_branch
      %1021 = sbr.rel (0) target = $region33
    $region32: #{tpu_custom_call.1} parent=1 // pred_region
      %s1023 = ssub.s32 256, 128
      %1024 = vsyncadd [#allocation3], %s1023
      %s1026 = sshll.u32 [#allocation2], 4
      %s1027 = int_to_ptr.vmem [resolvable:$true] %s1026
      %1029 = dma.vmem_to_hbm [thread:$0]  %s1027, 128, %s7, [#allocation3]
    $region33: #{tpu_custom_call.1} parent=1 // pred_fallthru
      _
    // Predicated region
    $region34: #{tpu_custom_call.1} parent=1 // pred_check
      _
    $region35: #{tpu_custom_call.1} parent=1 // pred_check_branch
      %1031 = sbr.rel (0) target = $region37
    $region36: #{tpu_custom_call.1} parent=1 // pred_region
      %1032 = dma.done [#allocation3], 256
    $region37: #{tpu_custom_call.1} parent=1 // pred_fallthru
      _
    %1033 = vsyncpa [#allocation3], 1

</llo_original>
